<compile_context>
chip_gen: v5e
topology: v5e:2x2
jax: 0.10.0
libtpu: 0.0.40
codegen_flags: <defaults>
</compile_context>

<pallas_src>
import functools

import jax
import jax.numpy as jnp
from jax.experimental import pallas as pl
from jax.experimental.pallas import tpu as pltpu

EPS = 1e-8

_COV_BUF_BUDGET_BYTES = 1 * 1024 * 1024   # per covariance output buffer (double-buffered)
_MAX_ROW_TILE = 2048
_MAX_LANE_TILE = 4096


def _round_up(v: int, m: int) -> int:
    return -(-v // m) * m


def diag_cov_kernel(x_ref, s_ref, cov_ref, *, half):
    """x_ref: (rows, D); s_ref: (H, lane_tile) one-hot scatter; cov_ref: (rows, lane_tile)."""
    xv = x_ref[...]
    logvar = xv[:, half:].astype(jnp.float32)     # in-vreg lane slice of the upper half
    var = jnp.exp(logvar) + EPS                   # EUP exp + VPU add, in f32
    # One-hot scatter on the MXU: (rows, H) @ (H, lane_tile) places var[n, i]
    # at flat index i*H + i and 0 elsewhere == diag_embed(var) for this lane tile.
    cov = jnp.dot(var, s_ref[...], preferred_element_type=jnp.float32)
    cov_ref[...] = cov.astype(cov_ref.dtype)


def diagonal_gaussian(x: jax.Array):
    """Returns (loc, covariance_matrix) of the factorised Gaussian posterior."""
    assert x.shape[-1] % 2 == 0
    batch = x.shape[:-1]
    D = int(x.shape[-1])
    H = D // 2
    HH = H * H
    N = 1
    for b in batch:
        N *= int(b)

    # loc is a pure slice of the first half -- keep it out of the kernel.
    loc = x[..., :H]

    # Flatten leading dims: contiguous reshape, free. The logvar half is sliced
    # inside the kernel, so it never round-trips through HBM separately.
    x_flat = x.reshape(N, D)

    # ---- lane tiling over the flattened H*H covariance ----------------------
    if HH <= _MAX_LANE_TILE or HH % 128 != 0:
        lane_tile = HH                      # full-extent block (lane-dense when HH % 128 == 0)
    else:
        lane_tile = _MAX_LANE_TILE
        while HH % lane_tile != 0:
            lane_tile -= 128
    num_lane_tiles = HH // lane_tile
    # TODO(synk): for very large H with HH % 128 != 0 a single (rows, HH) block can
    # exceed scoped VMEM; a padded-lane variant would be needed for that regime.

    # ---- row tiling ----------------------------------------------------------
    itemsize = jnp.dtype(x.dtype).itemsize
    sublane = {1: 32, 2: 16}.get(itemsize, 8)    # dtype-aware sublane packing
    if N <= sublane:
        row_tile = N                             # block == full dim (no masking needed)
    else:
        row_tile = _COV_BUF_BUDGET_BYTES // (lane_tile * max(itemsize, 4))
        row_tile = max(sublane, min(row_tile, _MAX_ROW_TILE))
        row_tile -= row_tile % sublane
        # keep >= ~4 row steps so v7x megacore sharding / pipelining have work
        row_tile = min(row_tile, _round_up(pl.cdiv(N, 4), sublane))
    num_row_tiles = pl.cdiv(N, row_tile)         # ragged tail masked by Pallas on writeback

    # One-hot scatter matrix: S[j, j*H + j] = 1, so var @ S == diag_embed(var).
    j = jnp.arange(H)
    scatter = jnp.zeros((H, HH), jnp.float32).at[j, j * (H + 1)].set(1.0)

    cov_flat = pl.pallas_call(
        functools.partial(diag_cov_kernel, half=H),
        out_shape=jax.ShapeDtypeStruct((N, HH), x.dtype),
        grid_spec=pltpu.PrefetchScalarGridSpec(
            num_scalar_prefetch=0,
            grid=(num_row_tiles, num_lane_tiles),          # lane axis inner -> x block reused
            in_specs=[
                pl.BlockSpec((row_tile, D), lambda r, l: (r, 0)),     # full rows of x
                pl.BlockSpec((H, lane_tile), lambda r, l: (0, l)),    # scatter matrix
            ],
            out_specs=pl.BlockSpec((row_tile, lane_tile), lambda r, l: (r, l)),
        ),
        compiler_params=pltpu.CompilerParams(
            dimension_semantics=("parallel", "parallel")),  # independent tiles
    )(x_flat, scatter)

    cov = cov_flat.reshape(*batch, H, H)          # contiguous -> free reshape
    return loc, cov


def _reference(x):
    H = x.shape[-1] // 2
    loc = x[..., :H]
    logvar = x[..., H:]
    var = jnp.exp(logvar) + EPS
    cov = jnp.zeros(var.shape + (H,), var.dtype)
    idx = jnp.arange(H)
    cov = cov.at[..., idx, idx].set(var)
    return loc, cov


if __name__ == "__main__":
    key = jax.random.PRNGKey(0)
    B, S, D = 2, 8, 32  # D must be even; latent dim H = D // 2 = 16
    x = jax.random.normal(key, (B, S, D), dtype=jnp.float32)

    loc, cov = diagonal_gaussian(x)
    jax.block_until_ready((loc, cov))

    loc_ref, cov_ref = _reference(x)
    assert loc.shape == (B, S, D // 2)
    assert cov.shape == (B, S, D // 2, D // 2)
    assert jnp.allclose(loc, loc_ref, atol=1e-6, rtol=1e-6)
    assert jnp.allclose(cov, cov_ref, atol=1e-6, rtol=1e-5)

    print("KERNEL_OK")
</pallas_src>

<mosaic_0001>
module attributes {stable_mosaic.version = 11 : i64} {
  func.func @diag_cov_kernel(%arg0: i32, %arg1: i32, %arg2: memref<8x32xf32, #tpu.memory_space<vmem>>, %arg3: memref<16x256xf32, #tpu.memory_space<vmem>>, %arg4: memref<8x256xf32, #tpu.memory_space<vmem>>) attributes {dimension_semantics = [#tpu.dimension_semantics<parallel>, #tpu.dimension_semantics<parallel>], iteration_bounds = array<i64: 2, 1>, scalar_prefetch = 0 : i64, scratch_operands = 0 : i64, tpu.core_type = #tpu.core_type<tc>, window_params = [{transform_indices = @transform_0, window_bounds = array<i64: 8, 32>}, {transform_indices = @transform_1, window_bounds = array<i64: 16, 256>}, {transform_indices = @transform_2, window_bounds = array<i64: 8, 256>}]} {
    %c0 = arith.constant 0 : index
    %c0_0 = arith.constant 0 : index
    %0 = vector.load %arg2[%c0, %c0_0] : memref<8x32xf32, #tpu.memory_space<vmem>>, vector<8x32xf32>
    %1 = vector.extract_strided_slice %0 {offsets = [0, 16], sizes = [8, 16], strides = [1, 1]} : vector<8x32xf32> to vector<8x16xf32>
    %2 = math.exp %1 : vector<8x16xf32>
    %cst = arith.constant 9.99999993E-9 : f32
    %3 = vector.broadcast %cst : f32 to vector<8x16xf32>
    %4 = arith.addf %2, %3 : vector<8x16xf32>
    %c0_1 = arith.constant 0 : index
    %c0_2 = arith.constant 0 : index
    %5 = vector.load %arg3[%c0_1, %c0_2] : memref<16x256xf32, #tpu.memory_space<vmem>>, vector<16x256xf32>
    %cst_3 = arith.constant dense<0.000000e+00> : vector<8x256xf32>
    %6 = tpu.matmul %4, %5, %cst_3 {dimension_numbers = #tpu.dot_dimension_numbers<[1], [0], [0], [1], [0, 0, 1, 1], [], []>} : vector<8x16xf32>, vector<16x256xf32>, vector<8x256xf32> -> vector<8x256xf32>
    %c0_4 = arith.constant 0 : index
    %c0_5 = arith.constant 0 : index
    %7 = vector.load %arg4[%c0_4, %c0_5] : memref<8x256xf32, #tpu.memory_space<vmem>>, vector<8x256xf32>
    tpu.vector_store %arg4[%c0_4, %c0_5], %6 {strides = array<i32>} : memref<8x256xf32, #tpu.memory_space<vmem>>, vector<8x256xf32>,
    return
  }
  func.func @transform_0(%arg0: i32, %arg1: i32) -> (i32, i32) {
    %c0_i32 = arith.constant 0 : i32
    %c0_i32_0 = arith.constant 0 : i32
    return %arg0, %c0_i32 : i32, i32
  }
  func.func @transform_1(%arg0: i32, %arg1: i32) -> (i32, i32) {
    %c0_i32 = arith.constant 0 : i32
    %c0_i32_0 = arith.constant 0 : i32
    return %c0_i32, %arg1 : i32, i32
  }
  func.func @transform_2(%arg0: i32, %arg1: i32) -> (i32, i32) {
    %c0_i32 = arith.constant 0 : i32
    return %arg0, %arg1 : i32, i32
  }
}

</mosaic_0001>

<llo_original>
// kernel: tpu_custom_call.1
$region0: #{tpu_custom_call.1}
  #allocation0 [shape = 'u32[]', space=smem, size = 0x4, offset = 0x4, fixed_abs, tag = 'smem constant byte address 0x4 - core index']
  #allocation1 [shape = 'u32[72,128]{1,0:T(1,128)}', space=vmem, size = 0x9000, scoped, tag = 'internal scratch']
  %s0 = inlined_call_operand.hbm [shape: f32[16,32], index: 0, kind: input, shape index: {}]
  %s1 = inlined_call_operand.hbm [shape: f32[16,256], index: 1, kind: input, shape index: {}]
  %s2 = inlined_call_operand.hbm [shape: f32[16,256], index: 2, kind: output, shape index: {}]
  %s3 = sld [smem:[#allocation0]]
  $region49: #{tpu_custom_call.1} parent=0
    _
  %s5 = ssub.s32 1, %s3
  %s6 = scalar_select 0, %s5, %s3
  $region1: #{tpu_custom_call.1} parent=0
    #allocation2 [shape = 'u8[8192]{0}', space=vmem, size = 0x2000, scoped, tag = 'input window, operand 0']
    #allocation3 [shape = 's32[2]{0}', space=sflag, size = 0x8, scoped, tag = 'scoped memory for tpu_custom_call.1']
    #allocation4 [shape = 's32[2]{0}', space=sflag, size = 0x8, scoped, tag = 'scoped memory for tpu_custom_call.1']
    #allocation5 [shape = 'u8[16384]{0}', space=vmem, size = 0x4000, scoped, tag = 'input window, operand 1, single buffered']
    #allocation6 [shape = 's32[1]{0}', space=sflag, size = 0x4, scoped, tag = 'scoped memory for tpu_custom_call.1']
    #allocation7 [shape = 'u8[16384]{0}', space=vmem, size = 0x4000, scoped, tag = 'output window, operand 0']
    %7 = vsyncpa [#allocation3], 0
    %s8 = scalar_lea.sflag [#allocation3], 1
    %9 = vsyncpa %s8, 0
    %10 = vsyncpa [#allocation6], 0
    %11 = vsyncpa [#allocation4], 0
    %s12 = scalar_lea.sflag [#allocation4], 1
    %13 = vsyncpa %s12, 0
    loop: start=0, step=1, limit=4
    $region2: #{tpu_custom_call.1} parent=1 // loop_pre_header
      _
    $region3: #{tpu_custom_call.1} parent=1 // loop_header
      %s15 = sphi 0, %s19
      %p16 = scmp.ge.s32.totalorder %s15, 4
      %s22 = sphi 0, %s34
      %s23 = sphi 0, %s30
      %s24 = sphi 0, %s22
      %s25 = sphi 0, %s23
      %s26 = sphi 0, %s24
      %s27 = sphi 0, %s25
      %s37 = sphi 0, %s39
      %s40 = sphi 0, %s37
      %s41 = sphi 0, %s40
      %s57 = sphi 0, %s41
      %s63 = sphi 0, %s65
      %s66 = sphi 0, %s63
      %s67 = sphi 0, %s66
      %s83 = sphi 0, %s67
      %s91 = sphi 0, %s93
      %s94 = sphi 0, %s91
      %s95 = sphi 0, %s94
      %s111 = sphi 0, %s95
    $region4: #{tpu_custom_call.1} parent=1 // loop_header_branch
      %18 = sbr.rel (%p16) target = $region8
    $region5: #{tpu_custom_call.1} parent=1 // loop_body
      %s20 = ssub.s32 %s15, 1
      %s21 = ssub.s32 %s15, 2
      %s28 = sadd.s32 1, %s23
      %p29 = scmp.ge.s32.totalorder %s28, 1
      %s30 = scalar_select %p29, 0, %s28
      %s31 = sadd.s32 1, %s22
      %s32 = scalar_select %p29, %s31, %s22
      %p33 = scmp.ge.s32.totalorder %s32, 2
      %s34 = scalar_select %p33, 0, %s32
      %s35 = ssub.s32 %s22, %s34
      %p36 = scmp.eq.s32.totalorder %s35, 0
      %s38 = sadd.s32 %s37, 1
      %s39 = scalar_select %p36, %s37, %s38
      %p42 = pneg %p36
      %p43 = scmp.eq.s32.totalorder %s15, 1
      %p44 = por %p42, %p43
      %p45 = scmp.ne.s32.totalorder %s37, %s40
      %p46 = scmp.eq.s32.totalorder %s15, 0
      %p47 = por %p45, %p46
      %p48 = scmp.ne.s32.totalorder %s37, %s40
      %p49 = scmp.eq.s32.totalorder %s20, 1
      %p50 = por %p48, %p49
      %p51 = scmp.ne.s32.totalorder %s40, %s41
      %p52 = scmp.eq.s32.totalorder %s20, 0
      %p53 = por %p51, %p52
      %p54 = scmp.ne.s32.totalorder %s40, %s41
      %p55 = scmp.eq.s32.totalorder %s21, 1
      %p56 = por %p54, %p55
      %p58 = scmp.ne.s32.totalorder %s41, %s57
      %p59 = scmp.eq.s32.totalorder %s21, 0
      %p60 = por %p58, %p59
      %s61 = ssub.s32 %s23, %s30
      %p62 = scmp.eq.s32.totalorder %s61, 0
      %s64 = sadd.s32 %s63, 1
      %s65 = scalar_select %p62, %s63, %s64
      %p68 = pneg %p62
      %p69 = scmp.eq.s32.totalorder %s15, 1
      %p70 = por %p68, %p69
      %p71 = scmp.ne.s32.totalorder %s63, %s66
      %p72 = scmp.eq.s32.totalorder %s15, 0
      %p73 = por %p71, %p72
      %p74 = scmp.ne.s32.totalorder %s63, %s66
      %p75 = scmp.eq.s32.totalorder %s20, 1
      %p76 = por %p74, %p75
      %p77 = scmp.ne.s32.totalorder %s66, %s67
      %p78 = scmp.eq.s32.totalorder %s20, 0
      %p79 = por %p77, %p78
      %p80 = scmp.ne.s32.totalorder %s66, %s67
      %p81 = scmp.eq.s32.totalorder %s21, 1
      %p82 = por %p80, %p81
      %p84 = scmp.ne.s32.totalorder %s67, %s83
      %p85 = scmp.eq.s32.totalorder %s21, 0
      %p86 = por %p84, %p85
      %s87 = ssub.s32 %s22, %s34
      %s88 = ssub.s32 %s23, %s30
      %s89 = sor.u32 %s87, %s88
      %p90 = scmp.eq.s32.totalorder %s89, 0
      %s92 = sadd.s32 %s91, 1
      %s93 = scalar_select %p90, %s91, %s92
      %p96 = pneg %p90
      %p97 = scmp.eq.s32.totalorder %s15, 1
      %p98 = por %p96, %p97
      %p99 = scmp.ne.s32.totalorder %s91, %s94
      %p100 = scmp.eq.s32.totalorder %s15, 0
      %p101 = por %p99, %p100
      %p102 = scmp.ne.s32.totalorder %s91, %s94
      %p103 = scmp.eq.s32.totalorder %s20, 1
      %p104 = por %p102, %p103
      %p105 = scmp.ne.s32.totalorder %s94, %s95
      %p106 = scmp.eq.s32.totalorder %s20, 0
      %p107 = por %p105, %p106
      %p108 = scmp.ne.s32.totalorder %s94, %s95
      %p109 = scmp.eq.s32.totalorder %s21, 1
      %p110 = por %p108, %p109
      %p112 = scmp.ne.s32.totalorder %s95, %s111
      %p113 = scmp.eq.s32.totalorder %s21, 0
      %p114 = por %p112, %p113
      %p115 = scmp.le.s32.totalorder 1, %s15
      %p116 = scmp.lt.s32.totalorder %s15, 3
      %p117 = pnand %p115, %p116
      %p118 = pneg %p117
      // Predicated region
      $region9: #{tpu_custom_call.1} parent=5 // pred_check
        _
      $region10: #{tpu_custom_call.1} parent=5 // pred_check_branch
        %120 = sbr.rel (%p117) target = $region12
      $region11: #{tpu_custom_call.1} parent=5 // pred_region
        %s121 = ssub.s32 %s15, 1
        // Predicated region
        $region13: #{tpu_custom_call.1} parent=11 // pred_check
          %p122 = pneg %p79
        $region14: #{tpu_custom_call.1} parent=11 // pred_check_branch
          %124 = sbr.rel (%p122) target = $region16
        $region15: #{tpu_custom_call.1} parent=11 // pred_region
          %s125 = smul.u32 2, %s25
          %127 = vsyncadd [#allocation6], 0
          %s128 = smul.addr %s125, 8
          %s129 = scalar_lea.hbm %s1, %s128
          %s130 = sshll.u32 %s129, 4
          %s131 = int_to_ptr.hbm [resolvable:$true] %s130
          %s132 = sshll.u32 [#allocation5], 4
          %s133 = int_to_ptr.vmem [resolvable:$true] %s132
          %138 = dma.hbm_to_vmem [thread:$0]  %s131, 512, %s133, [#allocation6], 256, 256, 16
        $region16: #{tpu_custom_call.1} parent=11 // pred_fallthru
          _
      $region12: #{tpu_custom_call.1} parent=5 // pred_fallthru
        _
      %p139 = scmp.lt.s32.totalorder %s15, 2
      // Predicated region
      $region17: #{tpu_custom_call.1} parent=5 // pred_check
        %p140 = pneg %p139
      $region18: #{tpu_custom_call.1} parent=5 // pred_check_branch
        %142 = sbr.rel (%p140) target = $region20
      $region19: #{tpu_custom_call.1} parent=5 // pred_region
        // Predicated region
        $region21: #{tpu_custom_call.1} parent=19 // pred_check
          %p143 = pneg %p47
        $region22: #{tpu_custom_call.1} parent=19 // pred_check_branch
          %145 = sbr.rel (%p143) target = $region24
        $region23: #{tpu_custom_call.1} parent=19 // pred_region
          %s146 = sand.u32 %s37, 1
          %s147 = scalar_lea.sflag [#allocation3], %s146
          %s148 = sand.u32 %s37, 1
          %s149 = smul.addr %s148, 8
          %s150 = scalar_lea.vmem [#allocation2], %s149
          %152 = vsyncadd %s147, 0
          %s153 = smul.addr %s22, 8
          %s154 = scalar_lea.hbm %s0, %s153
          %s156 = sshll.u32 %s154, 4
          %s157 = int_to_ptr.hbm [resolvable:$true] %s156
          %s158 = sshll.u32 %s150, 4
          %s159 = int_to_ptr.vmem [resolvable:$true] %s158
          %161 = dma.hbm_to_vmem [thread:$0]  %s157, 128, %s159, %s147
        $region24: #{tpu_custom_call.1} parent=19 // pred_fallthru
          _
      $region20: #{tpu_custom_call.1} parent=5 // pred_fallthru
        _
      %p162 = scmp.le.s32.totalorder 1, %s15
      %p163 = scmp.lt.s32.totalorder %s15, 3
      %p164 = pnand %p162, %p163
      %p165 = pneg %p164
      // Predicated region
      $region25: #{tpu_custom_call.1} parent=5 // pred_check
        _
      $region26: #{tpu_custom_call.1} parent=5 // pred_check_branch
        %167 = sbr.rel (%p164) target = $region28
      $region27: #{tpu_custom_call.1} parent=5 // pred_region
        %s168 = ssub.s32 %s15, 1
        %s169 = sand.u32 %s40, 1
        %s170 = scalar_lea.sflag [#allocation3], %s169
        %s171 = sand.u32 %s40, 1
        %s172 = smul.addr %s171, 8
        %s173 = scalar_lea.vmem [#allocation2], %s172
        // Predicated region
        $region29: #{tpu_custom_call.1} parent=27 // pred_check
          %p174 = pneg %p53
        $region30: #{tpu_custom_call.1} parent=27 // pred_check_branch
          %176 = sbr.rel (%p174) target = $region32
        $region31: #{tpu_custom_call.1} parent=27 // pred_region
          %178 = dma.done %s170, 128
        $region32: #{tpu_custom_call.1} parent=27 // pred_fallthru
          _
        // Predicated region
        $region33: #{tpu_custom_call.1} parent=27 // pred_check
          %p179 = pneg %p79
        $region34: #{tpu_custom_call.1} parent=27 // pred_check_branch
          %181 = sbr.rel (%p179) target = $region36
        $region35: #{tpu_custom_call.1} parent=27 // pred_region
          %183 = dma.done [#allocation6], 512
        $region36: #{tpu_custom_call.1} parent=27 // pred_fallthru
          _
        %s184 = sand.u32 %s40, 1
        %s185 = scalar_lea.sflag [#allocation3], %s184
        %s186 = sand.u32 %s40, 1
        %s187 = smul.addr %s186, 8
        %s188 = scalar_lea.vmem [#allocation2], %s187
        %p189 = pneg %p53
        %p190 = pneg %p50
        %p191 = pneg %p79
        %p192 = pneg %p76
        %p193 = pneg %p107
        %p194 = pneg %p104
        %s195 = sand.u32 %s94, 1
        %s196 = scalar_lea.sflag [#allocation4], %s195
        %s197 = sand.u32 %s94, 1
        %s198 = smul.addr %s197, 16
        %s199 = scalar_lea.vmem [#allocation7], %s198
        %s200 = smul.u32 2, %s25
        %s201 = smul.u32 2, %s25
        %v202 = vld [vmem:[%s173] sm:$0xff]
        %v203 = vmul.f32 %v202, 1.442695
        %v204 = vpow.pop %v203
        %v205 = vadd.f32 %v204, 1e-08
        %v206 = vld [vmem:[#allocation5] sm:$0xff]
        %v207 = vld [vmem:[#allocation5 + $0x8] sm:$0xff]
        %v208 = vld [vmem:[#allocation5 + $0x10] sm:$0xff]
        %v209 = vld [vmem:[#allocation5 + $0x18] sm:$0xff]
        %211 = vrot.lane.b32.xlu0 %v205, 112
        %v212 = vpop.permute.xlu0 %211
        %vm213 = vcmask 130048
        %v214 = vsel %vm213, %v212, 0
        %216 = vmatpush.msra.mxu0 0.0
        %217 = vmatpush.msra.mxu0 0.0
        %218 = vmatpush.msra.mxu0 0.0
        %219 = vmatpush.msra.mxu0 0.0
        %220 = vmatpush.msra.mxu0 0.0
        %221 = vmatpush.msra.mxu0 0.0
        %222 = vmatpush.msra.mxu0 0.0
        %223 = vmatpush.msra.mxu0 0.0
        %224 = vmatpush.msra.mxu0 0.0
        %225 = vmatpush.msra.mxu0 0.0
        %226 = vmatpush.msra.mxu0 0.0
        %227 = vmatpush.msra.mxu0 0.0
        %228 = vmatpush.msra.mxu0 0.0
        %229 = vmatpush.msra.mxu0 0.0
        %230 = vmatpush.msra.mxu0 %v208
        %231 = vmatpush.msra.mxu0 %v206
        %232 = vmatmul.f32.gmra.mxu0 %v214
        %v233 = vpop.f32.mrf.mxu0
        %v234 = vadd.f32 0.0, %v233
        %235 = vdwg.mxu0
        %236 = vmatpush.msra.mxu0 0.0
        %237 = vmatpush.msra.mxu0 0.0
        %238 = vmatpush.msra.mxu0 0.0
        %239 = vmatpush.msra.mxu0 0.0
        %240 = vmatpush.msra.mxu0 0.0
        %241 = vmatpush.msra.mxu0 0.0
        %242 = vmatpush.msra.mxu0 0.0
        %243 = vmatpush.msra.mxu0 0.0
        %244 = vmatpush.msra.mxu0 0.0
        %245 = vmatpush.msra.mxu0 0.0
        %246 = vmatpush.msra.mxu0 0.0
        %247 = vmatpush.msra.mxu0 0.0
        %248 = vmatpush.msra.mxu0 0.0
        %249 = vmatpush.msra.mxu0 0.0
        %250 = vmatpush.msra.mxu0 %v209
        %251 = vmatpush.msra.mxu0 %v207
        %252 = vmatmul.f32.gmra.mxu0 %v214
        %v253 = vpop.f32.mrf.mxu0
        %v254 = vadd.f32 0.0, %v253
        %255 = vdwg.mxu0
        %256 = vst [vmem:[%s199] sm:$0xff] %v234
        %257 = vst [vmem:[%s199 + $0x8] sm:$0xff] %v254
        %s258 = sand.u32 %s94, 1
        %s259 = scalar_lea.sflag [#allocation4], %s258
        %s260 = sand.u32 %s94, 1
        %s261 = smul.addr %s260, 16
        %s262 = scalar_lea.vmem [#allocation7], %s261
        // Predicated region
        $region37: #{tpu_custom_call.1} parent=27 // pred_check
          %p263 = pneg %p104
        $region38: #{tpu_custom_call.1} parent=27 // pred_check_branch
          %265 = sbr.rel (%p263) target = $region40
        $region39: #{tpu_custom_call.1} parent=27 // pred_region
          %s266 = smul.u32 2, %s25
          %268 = vsyncadd %s259, 0
          %s269 = smul.addr %s24, 2
          %s270 = sadd.s32 %s266, %s269
          %s271 = smul.addr %s270, 8
          %s272 = scalar_lea.hbm %s2, %s271
          %s274 = sshll.u32 %s262, 4
          %s275 = int_to_ptr.vmem [resolvable:$true] %s274
          %s276 = sshll.u32 %s272, 4
          %s277 = int_to_ptr.hbm [resolvable:$true] %s276
          %279 = dma.vmem_to_hbm [thread:$0]  %s275, 256, %s277, %s259
        $region40: #{tpu_custom_call.1} parent=27 // pred_fallthru
          _
      $region28: #{tpu_custom_call.1} parent=5 // pred_fallthru
        _
      %p280 = scmp.le.s32.totalorder 2, %s15
      // Predicated region
      $region41: #{tpu_custom_call.1} parent=5 // pred_check
        %p281 = pneg %p280
      $region42: #{tpu_custom_call.1} parent=5 // pred_check_branch
        %283 = sbr.rel (%p281) target = $region44
      $region43: #{tpu_custom_call.1} parent=5 // pred_region
        %s284 = ssub.s32 %s15, 2
        // Predicated region
        $region45: #{tpu_custom_call.1} parent=43 // pred_check
          %p285 = pneg %p110
        $region46: #{tpu_custom_call.1} parent=43 // pred_check_branch
          %287 = sbr.rel (%p285) target = $region48
        $region47: #{tpu_custom_call.1} parent=43 // pred_region
          %s288 = sand.u32 %s95, 1
          %s289 = scalar_lea.sflag [#allocation4], %s288
          %s290 = sand.u32 %s95, 1
          %s291 = smul.addr %s290, 16
          %s292 = scalar_lea.vmem [#allocation7], %s291
          %294 = dma.done %s289, 256
        $region48: #{tpu_custom_call.1} parent=43 // pred_fallthru
          _
      $region44: #{tpu_custom_call.1} parent=5 // pred_fallthru
        _
    $region6: #{tpu_custom_call.1} parent=1 // loop_footer
      %s19 = sadd.s32 1, %s15
    $region7: #{tpu_custom_call.1} parent=1 // loop_footer_branch
      %14 = sbr.rel target = $region3
    $region8: #{tpu_custom_call.1} parent=1 // loop_exit
      _
    %295 = vsyncpa [#allocation3], 1
    %s296 = scalar_lea.sflag [#allocation3], 1
    %297 = vsyncpa %s296, 1
    %298 = vsyncpa [#allocation6], 1
    %299 = vsyncpa [#allocation4], 1
    %s300 = scalar_lea.sflag [#allocation4], 1
    %301 = vsyncpa %s300, 1

</llo_original>
